<compile_context>
chip_gen: v7x
topology: tpu7x:2x2x1
jax: 0.10.0
libtpu: 0.0.40
codegen_flags: <defaults>
</compile_context>

<pallas_src>
import jax
import jax.numpy as jnp
from jax.experimental import pallas as pl
from jax.experimental.pallas import tpu as pltpu


def _round_up(v, m):
    return ((v + m - 1) // m) * m


def linear_kernel(x_ref, wt_ref, o_ref):
    # x_ref : (TN, D_IN)  row tile of the input
    # wt_ref: (D_IN, K)   whole pre-transposed weight (un-padded; K is full dim)
    # o_ref : (TN, K)     un-padded output tile (lane-masked stores)
    x = x_ref[...].astype(jnp.float32)
    wt = wt_ref[...].astype(jnp.float32)
    d_in = x.shape[1]
    # D_IN == 2 -> D_IN broadcast multiply-adds on the VPU, accumulated in f32.
    acc = x[:, 0:1] * wt[0:1, :]
    for d in range(1, d_in):                  # static trip count (== 2): unrolled
        acc = acc + x[:, d:d + 1] * wt[d:d + 1, :]
    o_ref[...] = acc.astype(o_ref.dtype)


def dummy_model_forward(x, weight, *, max_block_bytes=2 << 20):
    """Pallas equivalent of DummyModel.forward: F.linear(x, weight), no bias."""
    n, d_in = x.shape
    k, d_in_w = weight.shape
    assert d_in == d_in_w

    # Tiny (k, d_in) -> (d_in, k) transpose in the wrapper (negligible bytes).
    wt = weight.T

    # Row tile from a per-pipeline-buffer VMEM byte budget:
    #   output rows occupy round_up(k, 128) lanes, x rows occupy 128 lanes
    #   (lane padding of the (tn, 2) tile), both f32 in VMEM.
    k_lanes = _round_up(k, 128)
    per_buf_row_bytes = 4 * (k_lanes + 128)
    tn = max(8, (max_block_bytes // per_buf_row_bytes) // 8 * 8)
    tn = min(tn, _round_up(n, 8))
    # Ensure the "parallel" row axis has >= 2 tiles when n allows it, so a
    # 2-TensorCore chip (v7x) can shard the grid; no-op on v5e/v6e.
    if pl.cdiv(n, tn) < 2 and n >= 16:
        tn = _round_up(pl.cdiv(n, 2), 8)
    grid = (pl.cdiv(n, tn),)

    return pl.pallas_call(
        linear_kernel,
        out_shape=jax.ShapeDtypeStruct((n, k), x.dtype),     # un-padded output
        grid_spec=pltpu.PrefetchScalarGridSpec(
            num_scalar_prefetch=0,
            grid=grid,
            in_specs=[
                pl.BlockSpec((tn, d_in), lambda i: (i, 0)),   # row tile of x
                pl.BlockSpec((d_in, k), lambda i: (0, 0)),    # whole weight
            ],
            out_specs=pl.BlockSpec((tn, k), lambda i: (i, 0)),
        ),
        compiler_params=pltpu.CompilerParams(
            dimension_semantics=("parallel",),
        ),
    )(x, wt)


if __name__ == "__main__":
    key = jax.random.PRNGKey(0)
    k_x, k_w = jax.random.split(key)

    # Small shapes consistent with the module: nn.Linear(2, k), batch of rows.
    # N is not a multiple of the row tile -> exercises partial-block clipping.
    N = 520
    D_IN = 2
    K = 5

    x = jax.random.normal(k_x, (N, D_IN), dtype=jnp.float32)
    # Deterministic init mimicking nn.Linear default: U(-1/sqrt(in), 1/sqrt(in))
    bound = 1.0 / jnp.sqrt(jnp.float32(D_IN))
    weight = jax.random.uniform(
        k_w, (K, D_IN), dtype=jnp.float32, minval=-bound, maxval=bound
    )

    out = dummy_model_forward(x, weight)
    out = jax.block_until_ready(out)

    # Reference check against plain JAX (same semantics as F.linear w/o bias).
    ref = x @ weight.T
    assert out.shape == (N, K)
    assert jnp.allclose(out, ref, atol=1e-5, rtol=1e-5)

    print("KERNEL_OK")
</pallas_src>

<mosaic_0001>
module attributes {stable_mosaic.version = 11 : i64} {
  func.func @linear_kernel(%arg0: i32, %arg1: memref<264x2xf32, #tpu.memory_space<vmem>>, %arg2: memref<2x5xf32, #tpu.memory_space<vmem>>, %arg3: memref<264x5xf32, #tpu.memory_space<vmem>>) attributes {dimension_semantics = [#tpu.dimension_semantics<parallel>], iteration_bounds = array<i64: 2>, scalar_prefetch = 0 : i64, scratch_operands = 0 : i64, tpu.core_type = #tpu.core_type<tc>, window_params = [{transform_indices = @transform_0, window_bounds = array<i64: 264, 2>}, {pipeline_mode = #tpu.pipeline_mode<synchronous>, transform_indices = @transform_1, window_bounds = array<i64: 2, 5>}, {transform_indices = @transform_2, window_bounds = array<i64: 264, 5>}]} {
    %c0 = arith.constant 0 : index
    %c0_0 = arith.constant 0 : index
    %0 = vector.load %arg1[%c0, %c0_0] : memref<264x2xf32, #tpu.memory_space<vmem>>, vector<264x2xf32>
    %c0_1 = arith.constant 0 : index
    %c0_2 = arith.constant 0 : index
    %1 = vector.load %arg2[%c0_1, %c0_2] : memref<2x5xf32, #tpu.memory_space<vmem>>, vector<2x5xf32>
    %2 = vector.extract_strided_slice %0 {offsets = [0, 0], sizes = [264, 1], strides = [1, 1]} : vector<264x2xf32> to vector<264x1xf32>
    %3 = vector.extract_strided_slice %1 {offsets = [0, 0], sizes = [1, 5], strides = [1, 1]} : vector<2x5xf32> to vector<1x5xf32>
    %4 = vector.broadcast %2 : vector<264x1xf32> to vector<264x5xf32>
    %5 = vector.broadcast %3 : vector<1x5xf32> to vector<264x5xf32>
    %6 = arith.mulf %4, %5 : vector<264x5xf32>
    %7 = vector.extract_strided_slice %0 {offsets = [0, 1], sizes = [264, 1], strides = [1, 1]} : vector<264x2xf32> to vector<264x1xf32>
    %8 = vector.extract_strided_slice %1 {offsets = [1, 0], sizes = [1, 5], strides = [1, 1]} : vector<2x5xf32> to vector<1x5xf32>
    %9 = vector.broadcast %7 : vector<264x1xf32> to vector<264x5xf32>
    %10 = vector.broadcast %8 : vector<1x5xf32> to vector<264x5xf32>
    %11 = arith.mulf %9, %10 : vector<264x5xf32>
    %12 = arith.addf %6, %11 : vector<264x5xf32>
    %c0_3 = arith.constant 0 : index
    %c0_4 = arith.constant 0 : index
    %13 = vector.load %arg3[%c0_3, %c0_4] : memref<264x5xf32, #tpu.memory_space<vmem>>, vector<264x5xf32>
    tpu.vector_store %arg3[%c0_3, %c0_4], %12 {strides = array<i32>} : memref<264x5xf32, #tpu.memory_space<vmem>>, vector<264x5xf32>,
    return
  }
  func.func @transform_0(%arg0: i32) -> (i32, i32) {
    %c0_i32 = arith.constant 0 : i32
    %c0_i32_0 = arith.constant 0 : i32
    return %arg0, %c0_i32 : i32, i32
  }
  func.func @transform_1(%arg0: i32) -> (i32, i32) {
    %c0_i32 = arith.constant 0 : i32
    %c0_i32_0 = arith.constant 0 : i32
    %c0_i32_1 = arith.constant 0 : i32
    return %c0_i32, %c0_i32_0 : i32, i32
  }
  func.func @transform_2(%arg0: i32) -> (i32, i32) {
    %c0_i32 = arith.constant 0 : i32
    %c0_i32_0 = arith.constant 0 : i32
    return %arg0, %c0_i32 : i32, i32
  }
}

</mosaic_0001>

<llo_original>
// kernel: tpu_custom_call.1
$region0: #{tpu_custom_call.1}
  #allocation0 [shape = 'u32[]', space=smem, size = 0x4, offset = 0x4, fixed_abs, tag = 'smem constant byte address 0x4 - core index']
  #allocation1 [shape = 'u32[144,128]{1,0:T(1,128)}', space=vmem, size = 0x12000, scoped, tag = 'internal scratch']
  %s0 = inlined_call_operand.vmem [shape: f32[520,2], index: 0, kind: input, shape index: {}]
  %s1 = inlined_call_operand.vmem [shape: f32[2,5], index: 1, kind: input, shape index: {}]
  %s2 = inlined_call_operand.vmem [shape: f32[520,5], index: 2, kind: output, shape index: {}]
  %s3 = sld [smem:[#allocation0]]
  $region89: #{tpu_custom_call.1} parent=0
    _
  %s5 = ssub.s32 1, %s3
  %s6 = scalar_select 0, %s5, %s3
  $region1: #{tpu_custom_call.1} parent=0
    #allocation2 [shape = 'u8[270336]{0}', space=vmem, size = 0x42000, scoped, tag = 'output window, operand 0']
    loop: start=0, step=1, limit=4
    $region2: #{tpu_custom_call.1} parent=1 // loop_pre_header
      _
    $region3: #{tpu_custom_call.1} parent=1 // loop_header
      %s8 = sphi 0, %s12
      %p9 = scmp.ge.s32.totalorder %s8, 4
      %s18 = sphi 0, %s20
      %s21 = sphi 0, %s18
      %s22 = sphi 0, %s21
      %s38 = sphi 0, %s22
      %s42 = sphi 0, %s42
      %s44 = sphi 0, %s42
      %s45 = sphi 0, %s44
      %s59 = sphi 0, %s45
      %s65 = sphi 0, %s67
      %s68 = sphi 0, %s65
      %s69 = sphi 0, %s68
      %s85 = sphi 0, %s69
    $region4: #{tpu_custom_call.1} parent=1 // loop_header_branch
      %11 = sbr.rel (%p9) target = $region8
    $region5: #{tpu_custom_call.1} parent=1 // loop_body
      %s13 = ssub.s32 %s8, 1
      %s14 = ssub.s32 %s8, 2
      %s15 = sadd.s32 %s8, 1
      %s16 = ssub.s32 %s8, %s15
      %p17 = scmp.eq.s32.totalorder %s16, 0
      %s19 = sadd.s32 %s18, 1
      %s20 = scalar_select %p17, %s18, %s19
      %p23 = pneg %p17
      %p24 = scmp.eq.s32.totalorder %s8, 1
      %p25 = por %p23, %p24
      %p26 = scmp.ne.s32.totalorder %s18, %s21
      %p27 = scmp.eq.s32.totalorder %s8, 0
      %p28 = por %p26, %p27
      %p29 = scmp.ne.s32.totalorder %s18, %s21
      %p30 = scmp.eq.s32.totalorder %s13, 1
      %p31 = por %p29, %p30
      %p32 = scmp.ne.s32.totalorder %s21, %s22
      %p33 = scmp.eq.s32.totalorder %s13, 0
      %p34 = por %p32, %p33
      %p35 = scmp.ne.s32.totalorder %s21, %s22
      %p36 = scmp.eq.s32.totalorder %s14, 1
      %p37 = por %p35, %p36
      %p39 = scmp.ne.s32.totalorder %s22, %s38
      %p40 = scmp.eq.s32.totalorder %s14, 0
      %p41 = por %p39, %p40
      %s43 = sadd.s32 %s42, 1
      %p46 = scmp.eq.s32.totalorder %s8, 1
      %p47 = scmp.ne.s32.totalorder %s42, %s44
      %p48 = scmp.eq.s32.totalorder %s8, 0
      %p49 = por %p47, %p48
      %p50 = scmp.ne.s32.totalorder %s42, %s44
      %p51 = scmp.eq.s32.totalorder %s13, 1
      %p52 = por %p50, %p51
      %p53 = scmp.ne.s32.totalorder %s44, %s45
      %p54 = scmp.eq.s32.totalorder %s13, 0
      %p55 = por %p53, %p54
      %p56 = scmp.ne.s32.totalorder %s44, %s45
      %p57 = scmp.eq.s32.totalorder %s14, 1
      %p58 = por %p56, %p57
      %p60 = scmp.ne.s32.totalorder %s45, %s59
      %p61 = scmp.eq.s32.totalorder %s14, 0
      %p62 = por %p60, %p61
      %s63 = ssub.s32 %s8, %s15
      %p64 = scmp.eq.s32.totalorder %s63, 0
      %s66 = sadd.s32 %s65, 1
      %s67 = scalar_select %p64, %s65, %s66
      %p70 = pneg %p64
      %p71 = scmp.eq.s32.totalorder %s8, 1
      %p72 = por %p70, %p71
      %p73 = scmp.ne.s32.totalorder %s65, %s68
      %p74 = scmp.eq.s32.totalorder %s8, 0
      %p75 = por %p73, %p74
      %p76 = scmp.ne.s32.totalorder %s65, %s68
      %p77 = scmp.eq.s32.totalorder %s13, 1
      %p78 = por %p76, %p77
      %p79 = scmp.ne.s32.totalorder %s68, %s69
      %p80 = scmp.eq.s32.totalorder %s13, 0
      %p81 = por %p79, %p80
      %p82 = scmp.ne.s32.totalorder %s68, %s69
      %p83 = scmp.eq.s32.totalorder %s14, 1
      %p84 = por %p82, %p83
      %p86 = scmp.ne.s32.totalorder %s69, %s85
      %p87 = scmp.eq.s32.totalorder %s14, 0
      %p88 = por %p86, %p87
      %p89 = scmp.le.s32.totalorder 1, %s8
      %p90 = scmp.lt.s32.totalorder %s8, 3
      %p91 = pnand %p89, %p90
      %p92 = pneg %p91
      // Predicated region
      $region9: #{tpu_custom_call.1} parent=5 // pred_check
        _
      $region10: #{tpu_custom_call.1} parent=5 // pred_check_branch
        %94 = sbr.rel (%p91) target = $region12
      $region11: #{tpu_custom_call.1} parent=5 // pred_region
        %s95 = ssub.s32 %s8, 1
        // Predicated region
        $region13: #{tpu_custom_call.1} parent=11 // pred_check
          %p96 = pneg %p55
        $region14: #{tpu_custom_call.1} parent=11 // pred_check_branch
          %98 = sbr.rel (%p96) target = $region16
        $region15: #{tpu_custom_call.1} parent=11 // pred_region
          _
        $region16: #{tpu_custom_call.1} parent=11 // pred_fallthru
          _
      $region12: #{tpu_custom_call.1} parent=5 // pred_fallthru
        _
      %p99 = scmp.lt.s32.totalorder %s8, 2
      // Predicated region
      $region17: #{tpu_custom_call.1} parent=5 // pred_check
        %p100 = pneg %p99
      $region18: #{tpu_custom_call.1} parent=5 // pred_check_branch
        %102 = sbr.rel (%p100) target = $region20
      $region19: #{tpu_custom_call.1} parent=5 // pred_region
        // Predicated region
        $region21: #{tpu_custom_call.1} parent=19 // pred_check
          %p103 = pneg %p28
        $region22: #{tpu_custom_call.1} parent=19 // pred_check_branch
          %105 = sbr.rel (%p103) target = $region24
        $region23: #{tpu_custom_call.1} parent=19 // pred_region
          %s106 = smul.u32 33, %s8
          %s107 = ssub.s32 65, %s106
          %p108 = scmp.lt.s32.totalorder %s107, 33
          %s109 = scalar_select %p108, %s107, 33
          %s110 = smul.u32 128, %s109
          %p111 = scmp.lt.s32.totalorder %s106, 64
          %s112 = scalar_select %p111, %s106, 64
          %s113 = smul.addr %s112, 8
          %s114 = scalar_lea.vmem %s0, %s113
          %s115 = smul.u32 33, %s8
          %s116 = ssub.s32 65, %s115
          %p117 = scmp.lt.s32.totalorder %s116, 33
          %s118 = scalar_select %p117, %s116, 33
          %s119 = smul.u32 128, %s118
        $region24: #{tpu_custom_call.1} parent=19 // pred_fallthru
          _
      $region20: #{tpu_custom_call.1} parent=5 // pred_fallthru
        _
      %p120 = scmp.le.s32.totalorder 1, %s8
      %p121 = scmp.lt.s32.totalorder %s8, 3
      %p122 = pnand %p120, %p121
      %p123 = pneg %p122
      // Predicated region
      $region25: #{tpu_custom_call.1} parent=5 // pred_check
        _
      $region26: #{tpu_custom_call.1} parent=5 // pred_check_branch
        %125 = sbr.rel (%p122) target = $region28
      $region27: #{tpu_custom_call.1} parent=5 // pred_region
        %s126 = ssub.s32 %s8, 1
        %s127 = smul.u32 33, %s13
        %s128 = ssub.s32 65, %s127
        %p129 = scmp.lt.s32.totalorder %s128, 33
        %s130 = scalar_select %p129, %s128, 33
        %s131 = smul.u32 128, %s130
        %p132 = scmp.lt.s32.totalorder %s127, 64
        %s133 = scalar_select %p132, %s127, 64
        %s134 = smul.addr %s133, 8
        %s135 = scalar_lea.vmem %s0, %s134
        %p136 = pneg %p34
        %p137 = pneg %p31
        %p138 = pneg %p55
        %p139 = pneg %p52
        %p140 = pneg %p81
        %p141 = pneg %p78
        %s142 = sand.u32 %s68, 1
        %s143 = sand.u32 %s68, 1
        %s144 = smul.addr %s143, 264
        %s145 = scalar_lea.vmem [#allocation2], %s144
        %s146 = smul.u32 33, %s13
        %s147 = ssub.s32 65, %s146
        %p148 = scmp.lt.s32.totalorder %s147, 33
        %s149 = scalar_select %p148, %s147, 33
        %s150 = smul.u32 128, %s149
        %p151 = scmp.lt.s32.totalorder %s146, 64
        %s152 = scalar_select %p151, %s146, 64
        %s153 = smul.addr %s152, 8
        %s154 = scalar_lea.vmem %s0, %s153
        %s155 = smul.u32 33, %s13
        %s156 = ssub.s32 65, %s155
        %p157 = scmp.lt.s32.totalorder %s156, 33
        %s158 = scalar_select %p157, %s156, 33
        %s159 = smul.u32 128, %s158
        %s160 = smul.u32 33, %s13
        %s161 = ssub.s32 65, %s160
        %p162 = scmp.lt.s32.totalorder %s161, 33
        %s163 = scalar_select %p162, %s161, 33
        %s164 = smul.u32 128, %s163
        %v165 = vld [vmem:[%s154] sm:$0xff]
        %v166 = vld [vmem:[%s154 + $0x8] sm:$0xff]
        %v167 = vld [vmem:[%s154 + $0x10] sm:$0xff]
        %v168 = vld [vmem:[%s154 + $0x18] sm:$0xff]
        %v169 = vld [vmem:[%s154 + $0x20] sm:$0xff]
        %v170 = vld [vmem:[%s154 + $0x28] sm:$0xff]
        %v171 = vld [vmem:[%s154 + $0x30] sm:$0xff]
        %v172 = vld [vmem:[%s154 + $0x38] sm:$0xff]
        %v173 = vld [vmem:[%s154 + $0x40] sm:$0xff]
        %v174 = vld [vmem:[%s154 + $0x48] sm:$0xff]
        %v175 = vld [vmem:[%s154 + $0x50] sm:$0xff]
        %v176 = vld [vmem:[%s154 + $0x58] sm:$0xff]
        %v177 = vld [vmem:[%s154 + $0x60] sm:$0xff]
        %v178 = vld [vmem:[%s154 + $0x68] sm:$0xff]
        %v179 = vld [vmem:[%s154 + $0x70] sm:$0xff]
        %v180 = vld [vmem:[%s154 + $0x78] sm:$0xff]
        %v181 = vld [vmem:[%s154 + $0x80] sm:$0xff]
        %v182 = vld [vmem:[%s154 + $0x88] sm:$0xff]
        %v183 = vld [vmem:[%s154 + $0x90] sm:$0xff]
        %v184 = vld [vmem:[%s154 + $0x98] sm:$0xff]
        %v185 = vld [vmem:[%s154 + $0xa0] sm:$0xff]
        %v186 = vld [vmem:[%s154 + $0xa8] sm:$0xff]
        %v187 = vld [vmem:[%s154 + $0xb0] sm:$0xff]
        %v188 = vld [vmem:[%s154 + $0xb8] sm:$0xff]
        %v189 = vld [vmem:[%s154 + $0xc0] sm:$0xff]
        %v190 = vld [vmem:[%s154 + $0xc8] sm:$0xff]
        %v191 = vld [vmem:[%s154 + $0xd0] sm:$0xff]
        %v192 = vld [vmem:[%s154 + $0xd8] sm:$0xff]
        %v193 = vld [vmem:[%s154 + $0xe0] sm:$0xff]
        %v194 = vld [vmem:[%s154 + $0xe8] sm:$0xff]
        %v195 = vld [vmem:[%s154 + $0xf0] sm:$0xff]
        %v196 = vld [vmem:[%s154 + $0xf8] sm:$0xff]
        %v197 = vld [vmem:[%s154 + $0x100] sm:$0xff]
        %v198 = vld [vmem:[%s1] sm:$0x3]
        %200 = vset.pattern.permute.xlu0 0
        %201 = vperm.xlu0 %200, %v165
        %v202 = vpop.permute.xlu0 %201
        %205 = vset.pattern.permute.xlu0 0
        %206 = vperm.xlu0 %205, %v166
        %v207 = vpop.permute.xlu0 %206
        %210 = vset.pattern.permute.xlu0 0
        %211 = vperm.xlu0 %210, %v167
        %v212 = vpop.permute.xlu0 %211
        %215 = vset.pattern.permute.xlu0 0
        %216 = vperm.xlu0 %215, %v168
        %v217 = vpop.permute.xlu0 %216
        %220 = vset.pattern.permute.xlu0 0
        %221 = vperm.xlu0 %220, %v169
        %v222 = vpop.permute.xlu0 %221
        %225 = vset.pattern.permute.xlu0 0
        %226 = vperm.xlu0 %225, %v170
        %v227 = vpop.permute.xlu0 %226
        %230 = vset.pattern.permute.xlu0 0
        %231 = vperm.xlu0 %230, %v171
        %v232 = vpop.permute.xlu0 %231
        %235 = vset.pattern.permute.xlu0 0
        %236 = vperm.xlu0 %235, %v172
        %v237 = vpop.permute.xlu0 %236
        %240 = vset.pattern.permute.xlu0 0
        %241 = vperm.xlu0 %240, %v173
        %v242 = vpop.permute.xlu0 %241
        %245 = vset.pattern.permute.xlu0 0
        %246 = vperm.xlu0 %245, %v174
        %v247 = vpop.permute.xlu0 %246
        %250 = vset.pattern.permute.xlu0 0
        %251 = vperm.xlu0 %250, %v175
        %v252 = vpop.permute.xlu0 %251
        %255 = vset.pattern.permute.xlu0 0
        %256 = vperm.xlu0 %255, %v176
        %v257 = vpop.permute.xlu0 %256
        %260 = vset.pattern.permute.xlu0 0
        %261 = vperm.xlu0 %260, %v177
        %v262 = vpop.permute.xlu0 %261
        %265 = vset.pattern.permute.xlu0 0
        %266 = vperm.xlu0 %265, %v178
        %v267 = vpop.permute.xlu0 %266
        %270 = vset.pattern.permute.xlu0 0
        %271 = vperm.xlu0 %270, %v179
        %v272 = vpop.permute.xlu0 %271
        %275 = vset.pattern.permute.xlu0 0
        %276 = vperm.xlu0 %275, %v180
        %v277 = vpop.permute.xlu0 %276
        %280 = vset.pattern.permute.xlu0 0
        %281 = vperm.xlu0 %280, %v181
        %v282 = vpop.permute.xlu0 %281
        %285 = vset.pattern.permute.xlu0 0
        %286 = vperm.xlu0 %285, %v182
        %v287 = vpop.permute.xlu0 %286
        %290 = vset.pattern.permute.xlu0 0
        %291 = vperm.xlu0 %290, %v183
        %v292 = vpop.permute.xlu0 %291
        %295 = vset.pattern.permute.xlu0 0
        %296 = vperm.xlu0 %295, %v184
        %v297 = vpop.permute.xlu0 %296
        %300 = vset.pattern.permute.xlu0 0
        %301 = vperm.xlu0 %300, %v185
        %v302 = vpop.permute.xlu0 %301
        %305 = vset.pattern.permute.xlu0 0
        %306 = vperm.xlu0 %305, %v186
        %v307 = vpop.permute.xlu0 %306
        %310 = vset.pattern.permute.xlu0 0
        %311 = vperm.xlu0 %310, %v187
        %v312 = vpop.permute.xlu0 %311
        %315 = vset.pattern.permute.xlu0 0
        %316 = vperm.xlu0 %315, %v188
        %v317 = vpop.permute.xlu0 %316
        %320 = vset.pattern.permute.xlu0 0
        %321 = vperm.xlu0 %320, %v189
        %v322 = vpop.permute.xlu0 %321
        %325 = vset.pattern.permute.xlu0 0
        %326 = vperm.xlu0 %325, %v190
        %v327 = vpop.permute.xlu0 %326
        %330 = vset.pattern.permute.xlu0 0
        %331 = vperm.xlu0 %330, %v191
        %v332 = vpop.permute.xlu0 %331
        %335 = vset.pattern.permute.xlu0 0
        %336 = vperm.xlu0 %335, %v192
        %v337 = vpop.permute.xlu0 %336
        %340 = vset.pattern.permute.xlu0 0
        %341 = vperm.xlu0 %340, %v193
        %v342 = vpop.permute.xlu0 %341
        %345 = vset.pattern.permute.xlu0 0
        %346 = vperm.xlu0 %345, %v194
        %v347 = vpop.permute.xlu0 %346
        %350 = vset.pattern.permute.xlu0 0
        %351 = vperm.xlu0 %350, %v195
        %v352 = vpop.permute.xlu0 %351
        %355 = vset.pattern.permute.xlu0 0
        %356 = vperm.xlu0 %355, %v196
        %v357 = vpop.permute.xlu0 %356
        %360 = vset.pattern.permute.xlu0 0
        %361 = vperm.xlu0 %360, %v197
        %v362 = vpop.permute.xlu0 %361
        %v364 = vlaneseq
        %v365 = vshrl.u32 %v364, 7
        %v366 = vsub.s32 0, %v365
        %v367 = vrot.slane %v198, %v366
        %v368 = vmul.f32 %v202, %v367
        %v369 = vmul.f32 %v207, %v367
        %v370 = vmul.f32 %v212, %v367
        %v371 = vmul.f32 %v217, %v367
        %v372 = vmul.f32 %v222, %v367
        %v373 = vmul.f32 %v227, %v367
        %v374 = vmul.f32 %v232, %v367
        %v375 = vmul.f32 %v237, %v367
        %v376 = vmul.f32 %v242, %v367
        %v377 = vmul.f32 %v247, %v367
        %v378 = vmul.f32 %v252, %v367
        %v379 = vmul.f32 %v257, %v367
        %v380 = vmul.f32 %v262, %v367
        %v381 = vmul.f32 %v267, %v367
        %v382 = vmul.f32 %v272, %v367
        %v383 = vmul.f32 %v277, %v367
        %v384 = vmul.f32 %v282, %v367
        %v385 = vmul.f32 %v287, %v367
        %v386 = vmul.f32 %v292, %v367
        %v387 = vmul.f32 %v297, %v367
        %v388 = vmul.f32 %v302, %v367
        %v389 = vmul.f32 %v307, %v367
        %v390 = vmul.f32 %v312, %v367
        %v391 = vmul.f32 %v317, %v367
        %v392 = vmul.f32 %v322, %v367
        %v393 = vmul.f32 %v327, %v367
        %v394 = vmul.f32 %v332, %v367
        %v395 = vmul.f32 %v337, %v367
        %v396 = vmul.f32 %v342, %v367
        %v397 = vmul.f32 %v347, %v367
        %v398 = vmul.f32 %v352, %v367
        %v399 = vmul.f32 %v357, %v367
        %v400 = vmul.f32 %v362, %v367
        %401 = vset.pattern.permute.xlu0 1
        %402 = vperm.xlu0 %401, %v165
        %v403 = vpop.permute.xlu0 %402
        %405 = vset.pattern.permute.xlu0 1
        %406 = vperm.xlu0 %405, %v166
        %v407 = vpop.permute.xlu0 %406
        %409 = vset.pattern.permute.xlu0 1
        %410 = vperm.xlu0 %409, %v167
        %v411 = vpop.permute.xlu0 %410
        %413 = vset.pattern.permute.xlu0 1
        %414 = vperm.xlu0 %413, %v168
        %v415 = vpop.permute.xlu0 %414
        %417 = vset.pattern.permute.xlu0 1
        %418 = vperm.xlu0 %417, %v169
        %v419 = vpop.permute.xlu0 %418
        %421 = vset.pattern.permute.xlu0 1
        %422 = vperm.xlu0 %421, %v170
        %v423 = vpop.permute.xlu0 %422
        %425 = vset.pattern.permute.xlu0 1
        %426 = vperm.xlu0 %425, %v171
        %v427 = vpop.permute.xlu0 %426
        %429 = vset.pattern.permute.xlu0 1
        %430 = vperm.xlu0 %429, %v172
        %v431 = vpop.permute.xlu0 %430
        %433 = vset.pattern.permute.xlu0 1
        %434 = vperm.xlu0 %433, %v173
        %v435 = vpop.permute.xlu0 %434
        %437 = vset.pattern.permute.xlu0 1
        %438 = vperm.xlu0 %437, %v174
        %v439 = vpop.permute.xlu0 %438
        %441 = vset.pattern.permute.xlu0 1
        %442 = vperm.xlu0 %441, %v175
        %v443 = vpop.permute.xlu0 %442
        %445 = vset.pattern.permute.xlu0 1
        %446 = vperm.xlu0 %445, %v176
        %v447 = vpop.permute.xlu0 %446
        %449 = vset.pattern.permute.xlu0 1
        %450 = vperm.xlu0 %449, %v177
        %v451 = vpop.permute.xlu0 %450
        %453 = vset.pattern.permute.xlu0 1
        %454 = vperm.xlu0 %453, %v178
        %v455 = vpop.permute.xlu0 %454
        %457 = vset.pattern.permute.xlu0 1
        %458 = vperm.xlu0 %457, %v179
        %v459 = vpop.permute.xlu0 %458
        %461 = vset.pattern.permute.xlu0 1
        %462 = vperm.xlu0 %461, %v180
        %v463 = vpop.permute.xlu0 %462
        %465 = vset.pattern.permute.xlu0 1
        %466 = vperm.xlu0 %465, %v181
        %v467 = vpop.permute.xlu0 %466
        %469 = vset.pattern.permute.xlu0 1
        %470 = vperm.xlu0 %469, %v182
        %v471 = vpop.permute.xlu0 %470
        %473 = vset.pattern.permute.xlu0 1
        %474 = vperm.xlu0 %473, %v183
        %v475 = vpop.permute.xlu0 %474
        %477 = vset.pattern.permute.xlu0 1
        %478 = vperm.xlu0 %477, %v184
        %v479 = vpop.permute.xlu0 %478
        %481 = vset.pattern.permute.xlu0 1
        %482 = vperm.xlu0 %481, %v185
        %v483 = vpop.permute.xlu0 %482
        %485 = vset.pattern.permute.xlu0 1
        %486 = vperm.xlu0 %485, %v186
        %v487 = vpop.permute.xlu0 %486
        %489 = vset.pattern.permute.xlu0 1
        %490 = vperm.xlu0 %489, %v187
        %v491 = vpop.permute.xlu0 %490
        %493 = vset.pattern.permute.xlu0 1
        %494 = vperm.xlu0 %493, %v188
        %v495 = vpop.permute.xlu0 %494
        %497 = vset.pattern.permute.xlu0 1
        %498 = vperm.xlu0 %497, %v189
        %v499 = vpop.permute.xlu0 %498
        %501 = vset.pattern.permute.xlu0 1
        %502 = vperm.xlu0 %501, %v190
        %v503 = vpop.permute.xlu0 %502
        %505 = vset.pattern.permute.xlu0 1
        %506 = vperm.xlu0 %505, %v191
        %v507 = vpop.permute.xlu0 %506
        %509 = vset.pattern.permute.xlu0 1
        %510 = vperm.xlu0 %509, %v192
        %v511 = vpop.permute.xlu0 %510
        %513 = vset.pattern.permute.xlu0 1
        %514 = vperm.xlu0 %513, %v193
        %v515 = vpop.permute.xlu0 %514
        %517 = vset.pattern.permute.xlu0 1
        %518 = vperm.xlu0 %517, %v194
        %v519 = vpop.permute.xlu0 %518
        %521 = vset.pattern.permute.xlu0 1
        %522 = vperm.xlu0 %521, %v195
        %v523 = vpop.permute.xlu0 %522
        %525 = vset.pattern.permute.xlu0 1
        %526 = vperm.xlu0 %525, %v196
        %v527 = vpop.permute.xlu0 %526
        %529 = vset.pattern.permute.xlu0 1
        %530 = vperm.xlu0 %529, %v197
        %v531 = vpop.permute.xlu0 %530
        %v533 = vlaneseq
        %v534 = vshrl.u32 %v533, 7
        %v535 = vsub.s32 1, %v534
        %v536 = vrot.slane %v198, %v535
        %v537 = vmul.f32 %v403, %v536
        %v538 = vmul.f32 %v407, %v536
        %v539 = vmul.f32 %v411, %v536
        %v540 = vmul.f32 %v415, %v536
        %v541 = vmul.f32 %v419, %v536
        %v542 = vmul.f32 %v423, %v536
        %v543 = vmul.f32 %v427, %v536
        %v544 = vmul.f32 %v431, %v536
        %v545 = vmul.f32 %v435, %v536
        %v546 = vmul.f32 %v439, %v536
        %v547 = vmul.f32 %v443, %v536
        %v548 = vmul.f32 %v447, %v536
        %v549 = vmul.f32 %v451, %v536
        %v550 = vmul.f32 %v455, %v536
        %v551 = vmul.f32 %v459, %v536
        %v552 = vmul.f32 %v463, %v536
        %v553 = vmul.f32 %v467, %v536
        %v554 = vmul.f32 %v471, %v536
        %v555 = vmul.f32 %v475, %v536
        %v556 = vmul.f32 %v479, %v536
        %v557 = vmul.f32 %v483, %v536
        %v558 = vmul.f32 %v487, %v536
        %v559 = vmul.f32 %v491, %v536
        %v560 = vmul.f32 %v495, %v536
        %v561 = vmul.f32 %v499, %v536
        %v562 = vmul.f32 %v503, %v536
        %v563 = vmul.f32 %v507, %v536
        %v564 = vmul.f32 %v511, %v536
        %v565 = vmul.f32 %v515, %v536
        %v566 = vmul.f32 %v519, %v536
        %v567 = vmul.f32 %v523, %v536
        %v568 = vmul.f32 %v527, %v536
        %v569 = vmul.f32 %v531, %v536
        %v570 = vadd.f32 %v368, %v537
        %v571 = vadd.f32 %v369, %v538
        %v572 = vadd.f32 %v370, %v539
        %v573 = vadd.f32 %v371, %v540
        %v574 = vadd.f32 %v372, %v541
        %v575 = vadd.f32 %v373, %v542
        %v576 = vadd.f32 %v374, %v543
        %v577 = vadd.f32 %v375, %v544
        %v578 = vadd.f32 %v376, %v545
        %v579 = vadd.f32 %v377, %v546
        %v580 = vadd.f32 %v378, %v547
        %v581 = vadd.f32 %v379, %v548
        %v582 = vadd.f32 %v380, %v549
        %v583 = vadd.f32 %v381, %v550
        %v584 = vadd.f32 %v382, %v551
        %v585 = vadd.f32 %v383, %v552
        %v586 = vadd.f32 %v384, %v553
        %v587 = vadd.f32 %v385, %v554
        %v588 = vadd.f32 %v386, %v555
        %v589 = vadd.f32 %v387, %v556
        %v590 = vadd.f32 %v388, %v557
        %v591 = vadd.f32 %v389, %v558
        %v592 = vadd.f32 %v390, %v559
        %v593 = vadd.f32 %v391, %v560
        %v594 = vadd.f32 %v392, %v561
        %v595 = vadd.f32 %v393, %v562
        %v596 = vadd.f32 %v394, %v563
        %v597 = vadd.f32 %v395, %v564
        %v598 = vadd.f32 %v396, %v565
        %v599 = vadd.f32 %v397, %v566
        %v600 = vadd.f32 %v398, %v567
        %v601 = vadd.f32 %v399, %v568
        %v602 = vadd.f32 %v400, %v569
        %vm603 = vcmask 39936
        %604 = vst.msk [vmem:[%s145] sm:$0xff] %vm603, %v570
        %605 = vst.msk [vmem:[%s145 + $0x8] sm:$0xff] %vm603, %v571
        %606 = vst.msk [vmem:[%s145 + $0x10] sm:$0xff] %vm603, %v572
        %607 = vst.msk [vmem:[%s145 + $0x18] sm:$0xff] %vm603, %v573
        %608 = vst.msk [vmem:[%s145 + $0x20] sm:$0xff] %vm603, %v574
        %609 = vst.msk [vmem:[%s145 + $0x28] sm:$0xff] %vm603, %v575
        %610 = vst.msk [vmem:[%s145 + $0x30] sm:$0xff] %vm603, %v576
        %611 = vst.msk [vmem:[%s145 + $0x38] sm:$0xff] %vm603, %v577
        %612 = vst.msk [vmem:[%s145 + $0x40] sm:$0xff] %vm603, %v578
        %613 = vst.msk [vmem:[%s145 + $0x48] sm:$0xff] %vm603, %v579
        %614 = vst.msk [vmem:[%s145 + $0x50] sm:$0xff] %vm603, %v580
        %615 = vst.msk [vmem:[%s145 + $0x58] sm:$0xff] %vm603, %v581
        %616 = vst.msk [vmem:[%s145 + $0x60] sm:$0xff] %vm603, %v582
        %617 = vst.msk [vmem:[%s145 + $0x68] sm:$0xff] %vm603, %v583
        %618 = vst.msk [vmem:[%s145 + $0x70] sm:$0xff] %vm603, %v584
        %619 = vst.msk [vmem:[%s145 + $0x78] sm:$0xff] %vm603, %v585
        %620 = vst.msk [vmem:[%s145 + $0x80] sm:$0xff] %vm603, %v586
        %621 = vst.msk [vmem:[%s145 + $0x88] sm:$0xff] %vm603, %v587
        %622 = vst.msk [vmem:[%s145 + $0x90] sm:$0xff] %vm603, %v588
        %623 = vst.msk [vmem:[%s145 + $0x98] sm:$0xff] %vm603, %v589
        %624 = vst.msk [vmem:[%s145 + $0xa0] sm:$0xff] %vm603, %v590
        %625 = vst.msk [vmem:[%s145 + $0xa8] sm:$0xff] %vm603, %v591
        %626 = vst.msk [vmem:[%s145 + $0xb0] sm:$0xff] %vm603, %v592
        %627 = vst.msk [vmem:[%s145 + $0xb8] sm:$0xff] %vm603, %v593
        %628 = vst.msk [vmem:[%s145 + $0xc0] sm:$0xff] %vm603, %v594
        %629 = vst.msk [vmem:[%s145 + $0xc8] sm:$0xff] %vm603, %v595
        %630 = vst.msk [vmem:[%s145 + $0xd0] sm:$0xff] %vm603, %v596
        %631 = vst.msk [vmem:[%s145 + $0xd8] sm:$0xff] %vm603, %v597
        %632 = vst.msk [vmem:[%s145 + $0xe0] sm:$0xff] %vm603, %v598
        %633 = vst.msk [vmem:[%s145 + $0xe8] sm:$0xff] %vm603, %v599
        %634 = vst.msk [vmem:[%s145 + $0xf0] sm:$0xff] %vm603, %v600
        %635 = vst.msk [vmem:[%s145 + $0xf8] sm:$0xff] %vm603, %v601
        %636 = vst.msk [vmem:[%s145 + $0x100] sm:$0xff] %vm603, %v602
        %s637 = sand.u32 %s68, 1
        %s638 = sand.u32 %s68, 1
        %s639 = smul.addr %s638, 264
        %s640 = scalar_lea.vmem [#allocation2], %s639
        // Predicated region
        $region29: #{tpu_custom_call.1} parent=27 // pred_check
          %p641 = pneg %p78
        $region30: #{tpu_custom_call.1} parent=27 // pred_check_branch
          %643 = sbr.rel (%p641) target = $region32
        $region31: #{tpu_custom_call.1} parent=27 // pred_region
          %s644 = smul.u32 33, %s13
          %s645 = ssub.s32 65, %s644
          %p646 = scmp.lt.s32.totalorder %s645, 33
          %s647 = scalar_select %p646, %s645, 33
          %s648 = smul.u32 128, %s647
          %p649 = scmp.ne.s32.totalorder 0, %s648
          %s650 = smul.addr %s644, 8
          %s651 = scalar_lea.vmem %s2, %s650
          // Predicated region
          $region33: #{tpu_custom_call.1} parent=31 // pred_check
            %p652 = pneg %p649
          $region34: #{tpu_custom_call.1} parent=31 // pred_check_branch
            %654 = sbr.rel (%p652) target = $region36
          $region35: #{tpu_custom_call.1} parent=31 // pred_region
            // Predicated region
            $region37: #{tpu_custom_call.1} parent=35 // pred_check
              _
            $region38: #{tpu_custom_call.1} parent=35 // pred_check_branch
              %656 = sbr.rel (0) target = $region40
            $region39: #{tpu_custom_call.1} parent=35 // pred_region
              // Predicated region
              $region59: #{tpu_custom_call.1} parent=39 // pred_check
                _
              $region60: #{tpu_custom_call.1} parent=39 // pred_check_branch
                %770 = sbr.rel (0) target = $region62
              $region61: #{tpu_custom_call.1} parent=39 // pred_region
                %s771 = sdiv.u32.pop %s647, 33
                %s772 = srem.u32.pop %s647, 33
                // While loop
                $region63: #{tpu_custom_call.1} parent=61 // loop_pre_header
                  _
                $region64: #{tpu_custom_call.1} parent=61 // loop_header
                  %s774 = sphi 0, %s776
                  %p775 = scmp.ge.s32.totalorder %s774, %s771
                  %s779 = sphi 0, %s850
                  %s780 = sphi %s640, %s853
                  %s781 = sphi %s651, %s854
                $region65: #{tpu_custom_call.1} parent=61 // loop_header_branch
                  %778 = sbr.rel (%p775) target = $region69
                $region66: #{tpu_custom_call.1} parent=61 // loop_body
                  %v782 = vld [vmem:[%s780] sm:$0xff]
                  %783 = vst [vmem:[%s781] sm:$0xff] %v782
                  %v784 = vld [vmem:[%s780 + $0x8] sm:$0xff]
                  %785 = vst [vmem:[%s781 + $0x8] sm:$0xff] %v784
                  %v786 = vld [vmem:[%s780 + $0x10] sm:$0xff]
                  %787 = vst [vmem:[%s781 + $0x10] sm:$0xff] %v786
                  %v788 = vld [vmem:[%s780 + $0x18] sm:$0xff]
                  %789 = vst [vmem:[%s781 + $0x18] sm:$0xff] %v788
                  %v790 = vld [vmem:[%s780 + $0x20] sm:$0xff]
                  %791 = vst [vmem:[%s781 + $0x20] sm:$0xff] %v790
                  %v792 = vld [vmem:[%s780 + $0x28] sm:$0xff]
                  %793 = vst [vmem:[%s781 + $0x28] sm:$0xff] %v792
                  %v794 = vld [vmem:[%s780 + $0x30] sm:$0xff]
                  %795 = vst [vmem:[%s781 + $0x30] sm:$0xff] %v794
                  %v796 = vld [vmem:[%s780 + $0x38] sm:$0xff]
                  %797 = vst [vmem:[%s781 + $0x38] sm:$0xff] %v796
                  %v798 = vld [vmem:[%s780 + $0x40] sm:$0xff]
                  %799 = vst [vmem:[%s781 + $0x40] sm:$0xff] %v798
                  %v800 = vld [vmem:[%s780 + $0x48] sm:$0xff]
                  %801 = vst [vmem:[%s781 + $0x48] sm:$0xff] %v800
                  %v802 = vld [vmem:[%s780 + $0x50] sm:$0xff]
                  %803 = vst [vmem:[%s781 + $0x50] sm:$0xff] %v802
                  %v804 = vld [vmem:[%s780 + $0x58] sm:$0xff]
                  %805 = vst [vmem:[%s781 + $0x58] sm:$0xff] %v804
                  %v806 = vld [vmem:[%s780 + $0x60] sm:$0xff]
                  %807 = vst [vmem:[%s781 + $0x60] sm:$0xff] %v806
                  %v808 = vld [vmem:[%s780 + $0x68] sm:$0xff]
                  %809 = vst [vmem:[%s781 + $0x68] sm:$0xff] %v808
                  %v810 = vld [vmem:[%s780 + $0x70] sm:$0xff]
                  %811 = vst [vmem:[%s781 + $0x70] sm:$0xff] %v810
                  %v812 = vld [vmem:[%s780 + $0x78] sm:$0xff]
                  %813 = vst [vmem:[%s781 + $0x78] sm:$0xff] %v812
                  %v814 = vld [vmem:[%s780 + $0x80] sm:$0xff]
                  %815 = vst [vmem:[%s781 + $0x80] sm:$0xff] %v814
                  %v816 = vld [vmem:[%s780 + $0x88] sm:$0xff]
                  %817 = vst [vmem:[%s781 + $0x88] sm:$0xff] %v816
                  %v818 = vld [vmem:[%s780 + $0x90] sm:$0xff]
                  %819 = vst [vmem:[%s781 + $0x90] sm:$0xff] %v818
                  %v820 = vld [vmem:[%s780 + $0x98] sm:$0xff]
                  %821 = vst [vmem:[%s781 + $0x98] sm:$0xff] %v820
                  %v822 = vld [vmem:[%s780 + $0xa0] sm:$0xff]
                  %823 = vst [vmem:[%s781 + $0xa0] sm:$0xff] %v822
                  %v824 = vld [vmem:[%s780 + $0xa8] sm:$0xff]
                  %825 = vst [vmem:[%s781 + $0xa8] sm:$0xff] %v824
                  %v826 = vld [vmem:[%s780 + $0xb0] sm:$0xff]
                  %827 = vst [vmem:[%s781 + $0xb0] sm:$0xff] %v826
                  %v828 = vld [vmem:[%s780 + $0xb8] sm:$0xff]
                  %829 = vst [vmem:[%s781 + $0xb8] sm:$0xff] %v828
                  %v830 = vld [vmem:[%s780 + $0xc0] sm:$0xff]
                  %831 = vst [vmem:[%s781 + $0xc0] sm:$0xff] %v830
                  %v832 = vld [vmem:[%s780 + $0xc8] sm:$0xff]
                  %833 = vst [vmem:[%s781 + $0xc8] sm:$0xff] %v832
                  %v834 = vld [vmem:[%s780 + $0xd0] sm:$0xff]
                  %835 = vst [vmem:[%s781 + $0xd0] sm:$0xff] %v834
                  %v836 = vld [vmem:[%s780 + $0xd8] sm:$0xff]
                  %837 = vst [vmem:[%s781 + $0xd8] sm:$0xff] %v836
                  %v838 = vld [vmem:[%s780 + $0xe0] sm:$0xff]
                  %839 = vst [vmem:[%s781 + $0xe0] sm:$0xff] %v838
                  %v840 = vld [vmem:[%s780 + $0xe8] sm:$0xff]
                  %841 = vst [vmem:[%s781 + $0xe8] sm:$0xff] %v840
                  %v842 = vld [vmem:[%s780 + $0xf0] sm:$0xff]
                  %843 = vst [vmem:[%s781 + $0xf0] sm:$0xff] %v842
                  %v844 = vld [vmem:[%s780 + $0xf8] sm:$0xff]
                  %845 = vst [vmem:[%s781 + $0xf8] sm:$0xff] %v844
                  %v846 = vld [vmem:[%s780 + $0x100] sm:$0xff]
                  %847 = vst [vmem:[%s781 + $0x100] sm:$0xff] %v846
                  %s848 = sadd.s32 1, %s779
                  %p849 = scmp.ge.s32.totalorder %s848, %s771
                  %s850 = scalar_select %p849, 0, %s848
                  %s851 = smul.u32 %s850, 264
                  %s852 = smul.u32 %s850, 264
                  %s853 = scalar_lea.vmem %s640, %s851 [#allocation2]
                  %s854 = scalar_lea.vmem %s651, %s852
                $region67: #{tpu_custom_call.1} parent=61 // loop_footer
                  %s776 = sadd.s32 %s774, 1
                $region68: #{tpu_custom_call.1} parent=61 // loop_footer_branch
                  %773 = sbr.rel target = $region64
                $region69: #{tpu_custom_call.1} parent=61 // loop_exit
                  _
                %s855 = sdiv.u32.pop %s647, 33
                %s856 = srem.u32.pop %s647, 33
                %s857 = smul.u32 %s855, 33
                %s858 = smul.u32 8, %s857
                %s859 = scalar_lea.vmem %s640, %s858 [#allocation2]
                %s860 = smul.u32 8, %s857
                %s861 = scalar_lea.vmem %s651, %s860
                // While loop
                $region70: #{tpu_custom_call.1} parent=61 // loop_pre_header
                  _
                $region71: #{tpu_custom_call.1} parent=61 // loop_header
                  %s863 = sphi 0, %s865
                  %p864 = scmp.ge.s32.totalorder %s863, %s856
                  %s868 = sphi 0, %s875
                  %s869 = sphi %s859, %s878
                  %s870 = sphi %s861, %s879
                $region72: #{tpu_custom_call.1} parent=61 // loop_header_branch
                  %867 = sbr.rel (%p864) target = $region76
                $region73: #{tpu_custom_call.1} parent=61 // loop_body
                  %v871 = vld [vmem:[%s869] sm:$0xff]
                  %872 = vst [vmem:[%s870] sm:$0xff] %v871
                  %s873 = sadd.s32 1, %s868
                  %p874 = scmp.ge.s32.totalorder %s873, %s856
                  %s875 = scalar_select %p874, 0, %s873
                  %s876 = smul.u32 %s875, 8
                  %s877 = smul.u32 %s875, 8
                  %s878 = scalar_lea.vmem %s859, %s876 [#allocation2]
                  %s879 = scalar_lea.vmem %s861, %s877
                $region74: #{tpu_custom_call.1} parent=61 // loop_footer
                  %s865 = sadd.s32 %s863, 1
                $region75: #{tpu_custom_call.1} parent=61 // loop_footer_branch
                  %862 = sbr.rel target = $region71
                $region76: #{tpu_custom_call.1} parent=61 // loop_exit
                  _
              $region62: #{tpu_custom_call.1} parent=39 // pred_fallthru
                _
              // Predicated region
              $region77: #{tpu_custom_call.1} parent=39 // pred_check
                _
              $region78: #{tpu_custom_call.1} parent=39 // pred_check_branch
                %881 = sbr.rel target = $region80
              $region79: #{tpu_custom_call.1} parent=39 // pred_region
                _
              $region80: #{tpu_custom_call.1} parent=39 // pred_fallthru
                _
            $region40: #{tpu_custom_call.1} parent=35 // pred_fallthru
              _
            // Predicated region
            $region41: #{tpu_custom_call.1} parent=35 // pred_check
              _
            $region42: #{tpu_custom_call.1} parent=35 // pred_check_branch
              %658 = sbr.rel target = $region44
            $region43: #{tpu_custom_call.1} parent=35 // pred_region
              %s660 = sdiv.u32.pop %s647, 33
              %s661 = srem.u32.pop %s647, 33
              // While loop
              $region45: #{tpu_custom_call.1} parent=43 // loop_pre_header
                _
              $region46: #{tpu_custom_call.1} parent=43 // loop_header
                %s663 = sphi 0, %s665
                %p664 = scmp.ge.s32.totalorder %s663, %s660
                %s668 = sphi 0, %s739
                %s669 = sphi %s640, %s742
                %s670 = sphi %s651, %s743
              $region47: #{tpu_custom_call.1} parent=43 // loop_header_branch
                %667 = sbr.rel (%p664) target = $region51
              $region48: #{tpu_custom_call.1} parent=43 // loop_body
                %v671 = vld [vmem:[%s669] sm:$0xff]
                %672 = vst [vmem:[%s670] sm:$0xff] %v671
                %v673 = vld [vmem:[%s669 + $0x8] sm:$0xff]
                %674 = vst [vmem:[%s670 + $0x8] sm:$0xff] %v673
                %v675 = vld [vmem:[%s669 + $0x10] sm:$0xff]
                %676 = vst [vmem:[%s670 + $0x10] sm:$0xff] %v675
                %v677 = vld [vmem:[%s669 + $0x18] sm:$0xff]
                %678 = vst [vmem:[%s670 + $0x18] sm:$0xff] %v677
                %v679 = vld [vmem:[%s669 + $0x20] sm:$0xff]
                %680 = vst [vmem:[%s670 + $0x20] sm:$0xff] %v679
                %v681 = vld [vmem:[%s669 + $0x28] sm:$0xff]
                %682 = vst [vmem:[%s670 + $0x28] sm:$0xff] %v681
                %v683 = vld [vmem:[%s669 + $0x30] sm:$0xff]
                %684 = vst [vmem:[%s670 + $0x30] sm:$0xff] %v683
                %v685 = vld [vmem:[%s669 + $0x38] sm:$0xff]
                %686 = vst [vmem:[%s670 + $0x38] sm:$0xff] %v685
                %v687 = vld [vmem:[%s669 + $0x40] sm:$0xff]
                %688 = vst [vmem:[%s670 + $0x40] sm:$0xff] %v687
                %v689 = vld [vmem:[%s669 + $0x48] sm:$0xff]
                %690 = vst [vmem:[%s670 + $0x48] sm:$0xff] %v689
                %v691 = vld [vmem:[%s669 + $0x50] sm:$0xff]
                %692 = vst [vmem:[%s670 + $0x50] sm:$0xff] %v691
                %v693 = vld [vmem:[%s669 + $0x58] sm:$0xff]
                %694 = vst [vmem:[%s670 + $0x58] sm:$0xff] %v693
                %v695 = vld [vmem:[%s669 + $0x60] sm:$0xff]
                %696 = vst [vmem:[%s670 + $0x60] sm:$0xff] %v695
                %v697 = vld [vmem:[%s669 + $0x68] sm:$0xff]
                %698 = vst [vmem:[%s670 + $0x68] sm:$0xff] %v697
                %v699 = vld [vmem:[%s669 + $0x70] sm:$0xff]
                %700 = vst [vmem:[%s670 + $0x70] sm:$0xff] %v699
                %v701 = vld [vmem:[%s669 + $0x78] sm:$0xff]
                %702 = vst [vmem:[%s670 + $0x78] sm:$0xff] %v701
                %v703 = vld [vmem:[%s669 + $0x80] sm:$0xff]
                %704 = vst [vmem:[%s670 + $0x80] sm:$0xff] %v703
                %v705 = vld [vmem:[%s669 + $0x88] sm:$0xff]
                %706 = vst [vmem:[%s670 + $0x88] sm:$0xff] %v705
                %v707 = vld [vmem:[%s669 + $0x90] sm:$0xff]
                %708 = vst [vmem:[%s670 + $0x90] sm:$0xff] %v707
                %v709 = vld [vmem:[%s669 + $0x98] sm:$0xff]
                %710 = vst [vmem:[%s670 + $0x98] sm:$0xff] %v709
                %v711 = vld [vmem:[%s669 + $0xa0] sm:$0xff]
                %712 = vst [vmem:[%s670 + $0xa0] sm:$0xff] %v711
                %v713 = vld [vmem:[%s669 + $0xa8] sm:$0xff]
                %714 = vst [vmem:[%s670 + $0xa8] sm:$0xff] %v713
                %v715 = vld [vmem:[%s669 + $0xb0] sm:$0xff]
                %716 = vst [vmem:[%s670 + $0xb0] sm:$0xff] %v715
                %v717 = vld [vmem:[%s669 + $0xb8] sm:$0xff]
                %718 = vst [vmem:[%s670 + $0xb8] sm:$0xff] %v717
                %v719 = vld [vmem:[%s669 + $0xc0] sm:$0xff]
                %720 = vst [vmem:[%s670 + $0xc0] sm:$0xff] %v719
                %v721 = vld [vmem:[%s669 + $0xc8] sm:$0xff]
                %722 = vst [vmem:[%s670 + $0xc8] sm:$0xff] %v721
                %v723 = vld [vmem:[%s669 + $0xd0] sm:$0xff]
                %724 = vst [vmem:[%s670 + $0xd0] sm:$0xff] %v723
                %v725 = vld [vmem:[%s669 + $0xd8] sm:$0xff]
                %726 = vst [vmem:[%s670 + $0xd8] sm:$0xff] %v725
                %v727 = vld [vmem:[%s669 + $0xe0] sm:$0xff]
                %728 = vst [vmem:[%s670 + $0xe0] sm:$0xff] %v727
                %v729 = vld [vmem:[%s669 + $0xe8] sm:$0xff]
                %730 = vst [vmem:[%s670 + $0xe8] sm:$0xff] %v729
                %v731 = vld [vmem:[%s669 + $0xf0] sm:$0xff]
                %732 = vst [vmem:[%s670 + $0xf0] sm:$0xff] %v731
                %v733 = vld [vmem:[%s669 + $0xf8] sm:$0xff]
                %734 = vst [vmem:[%s670 + $0xf8] sm:$0xff] %v733
                %v735 = vld [vmem:[%s669 + $0x100] sm:$0xff]
                %736 = vst [vmem:[%s670 + $0x100] sm:$0xff] %v735
                %s737 = sadd.s32 1, %s668
                %p738 = scmp.ge.s32.totalorder %s737, %s660
                %s739 = scalar_select %p738, 0, %s737
                %s740 = smul.u32 %s739, 264
                %s741 = smul.u32 %s739, 264
                %s742 = scalar_lea.vmem %s640, %s740 [#allocation2]
                %s743 = scalar_lea.vmem %s651, %s741
              $region49: #{tpu_custom_call.1} parent=43 // loop_footer
                %s665 = sadd.s32 %s663, 1
              $region50: #{tpu_custom_call.1} parent=43 // loop_footer_branch
                %662 = sbr.rel target = $region46
              $region51: #{tpu_custom_call.1} parent=43 // loop_exit
                _
              %s744 = sdiv.u32.pop %s647, 33
              %s745 = srem.u32.pop %s647, 33
              %s746 = smul.u32 %s744, 33
              %s747 = smul.u32 8, %s746
              %s748 = scalar_lea.vmem %s640, %s747 [#allocation2]
              %s749 = smul.u32 8, %s746
              %s750 = scalar_lea.vmem %s651, %s749
              // While loop
              $region52: #{tpu_custom_call.1} parent=43 // loop_pre_header
                _
              $region53: #{tpu_custom_call.1} parent=43 // loop_header
                %s752 = sphi 0, %s754
                %p753 = scmp.ge.s32.totalorder %s752, %s745
                %s757 = sphi 0, %s764
                %s758 = sphi %s748, %s767
                %s759 = sphi %s750, %s768
              $region54: #{tpu_custom_call.1} parent=43 // loop_header_branch
                %756 = sbr.rel (%p753) target = $region58
              $region55: #{tpu_custom_call.1} parent=43 // loop_body
                %v760 = vld [vmem:[%s758] sm:$0xff]
                %761 = vst [vmem:[%s759] sm:$0xff] %v760
                %s762 = sadd.s32 1, %s757
                %p763 = scmp.ge.s32.totalorder %s762, %s745
                %s764 = scalar_select %p763, 0, %s762
                %s765 = smul.u32 %s764, 8
                %s766 = smul.u32 %s764, 8
                %s767 = scalar_lea.vmem %s748, %s765 [#allocation2]
                %s768 = scalar_lea.vmem %s750, %s766
              $region56: #{tpu_custom_call.1} parent=43 // loop_footer
                %s754 = sadd.s32 %s752, 1
              $region57: #{tpu_custom_call.1} parent=43 // loop_footer_branch
                %751 = sbr.rel target = $region53
              $region58: #{tpu_custom_call.1} parent=43 // loop_exit
                _
            $region44: #{tpu_custom_call.1} parent=35 // pred_fallthru
              _
          $region36: #{tpu_custom_call.1} parent=31 // pred_fallthru
            _
          %882 = vnop
        $region32: #{tpu_custom_call.1} parent=27 // pred_fallthru
          _
      $region28: #{tpu_custom_call.1} parent=5 // pred_fallthru
        _
      %p883 = scmp.le.s32.totalorder 2, %s8
      // Predicated region
      $region81: #{tpu_custom_call.1} parent=5 // pred_check
        %p884 = pneg %p883
      $region82: #{tpu_custom_call.1} parent=5 // pred_check_branch
        %886 = sbr.rel (%p884) target = $region84
      $region83: #{tpu_custom_call.1} parent=5 // pred_region
        %s887 = ssub.s32 %s8, 2
        // Predicated region
        $region85: #{tpu_custom_call.1} parent=83 // pred_check
          %p888 = pneg %p84
        $region86: #{tpu_custom_call.1} parent=83 // pred_check_branch
          %890 = sbr.rel (%p888) target = $region88
        $region87: #{tpu_custom_call.1} parent=83 // pred_region
          %s891 = sand.u32 %s69, 1
          %s892 = sand.u32 %s69, 1
          %s893 = smul.addr %s892, 264
          %s894 = scalar_lea.vmem [#allocation2], %s893
        $region88: #{tpu_custom_call.1} parent=83 // pred_fallthru
          _
      $region84: #{tpu_custom_call.1} parent=5 // pred_fallthru
        _
    $region6: #{tpu_custom_call.1} parent=1 // loop_footer
      %s12 = sadd.s32 1, %s8
    $region7: #{tpu_custom_call.1} parent=1 // loop_footer_branch
      %7 = sbr.rel target = $region3
    $region8: #{tpu_custom_call.1} parent=1 // loop_exit
      _

</llo_original>
